<compile_context>
chip_gen: v5e
topology: v5e:2x2
jax: 0.10.0
libtpu: 0.0.40
codegen_flags: <defaults>
</compile_context>

<pallas_src>
import jax
import jax.numpy as jnp
from jax.experimental import pallas as pl
from jax.experimental.pallas import tpu as pltpu

# Only bother splitting the copy into multiple concurrent DMAs when the tensor
# is at least this large; below that a single DMA is already overhead-bound.
_DMA_CHUNK_MIN_BYTES = 1 << 20     # 1 MiB
_MAX_DMA_CHUNKS = 8                # concurrent DMAs for large tensors


def _chunk_bounds(leading_dim: int, nbytes: int):
    """Static (start, size) ranges along the leading axis, or None for a single copy."""
    if leading_dim < 2 or nbytes < _DMA_CHUNK_MIN_BYTES:
        return None
    n = min(_MAX_DMA_CHUNKS, leading_dim)
    base, rem = divmod(leading_dim, n)
    bounds = []
    start = 0
    for i in range(n):
        size = base + (1 if i < rem else 0)
        bounds.append((start, size))
        start += size
    return bounds


def _make_identity_dma_kernel(chunk_bounds):
    """Build an HBM->HBM copy kernel; returns (kernel, num_dma_semaphores)."""
    if chunk_bounds is None:
        def kernel(x_hbm, o_hbm, sem):
            cp = pltpu.make_async_copy(x_hbm, o_hbm, sem.at[0])
            cp.start()
            cp.wait()
        return kernel, 1

    n = len(chunk_bounds)

    def kernel(x_hbm, o_hbm, sem):
        # Issue all DMAs first so they are in flight concurrently, then wait.
        copies = []
        for i, (start, size) in enumerate(chunk_bounds):
            cp = pltpu.make_async_copy(
                x_hbm.at[pl.ds(start, size)],
                o_hbm.at[pl.ds(start, size)],
                sem.at[i],
            )
            cp.start()
            copies.append(cp)
        for cp in copies:
            cp.wait()

    return kernel, n


def adaptive_loss_forward(x: jax.Array, *, use_kernel: bool = True) -> jax.Array:
    """Pallas implementation of adaptive_loss.forward (identity).

    use_kernel=False returns the input directly — the truly optimal path and the
    right choice when the caller donates `x` (no copy is ever needed for an
    identity with a donated buffer).
    """
    if not use_kernel:
        return x
    # Degenerate shapes: nothing to copy / no leading axis to slice.
    if x.ndim == 0 or x.size == 0:
        return x

    itemsize = jnp.dtype(x.dtype).itemsize
    nbytes = x.size * itemsize
    bounds = _chunk_bounds(x.shape[0], nbytes)
    kernel, n_sems = _make_identity_dma_kernel(bounds)

    return pl.pallas_call(
        kernel,
        out_shape=jax.ShapeDtypeStruct(x.shape, x.dtype),
        in_specs=[pl.BlockSpec(memory_space=pl.ANY)],    # raw HBM ref, no auto-DMA
        out_specs=pl.BlockSpec(memory_space=pl.ANY),     # raw HBM ref, written by DMA
        scratch_shapes=[pltpu.SemaphoreType.DMA((n_sems,))],
        cost_estimate=pl.CostEstimate(
            flops=0, transcendentals=0, bytes_accessed=2 * nbytes),
    )(x)


if __name__ == "__main__":
    key = jax.random.PRNGKey(0)

    # Small NCHW input consistent with a typical loss-module call.
    x = jax.random.normal(key, (2, 4, 16, 16), dtype=jnp.float32)
    y = jax.block_until_ready(adaptive_loss_forward(x))
    assert y.shape == x.shape and y.dtype == x.dtype
    assert bool(jnp.all(y == x))

    # Odd, non-tile-divisible shape: no padding / slicing needed with the DMA path.
    x_odd = jax.random.normal(jax.random.PRNGKey(0), (3, 5, 7), dtype=jnp.float32)
    y_odd = jax.block_until_ready(adaptive_loss_forward(x_odd))
    assert y_odd.shape == x_odd.shape and y_odd.dtype == x_odd.dtype
    assert bool(jnp.all(y_odd == x_odd))

    # Mid-size input exercising the multi-DMA (chunked) path.
    x_big = jax.random.normal(jax.random.PRNGKey(0), (8, 256, 256), dtype=jnp.float32)
    y_big = jax.block_until_ready(adaptive_loss_forward(x_big))
    assert bool(jnp.all(y_big == x_big))

    print("KERNEL_OK")
</pallas_src>

<mosaic_0001>
module attributes {stable_mosaic.version = 11 : i64} {
  func.func @kernel(%arg0: memref<2x4x16x16xf32, #tpu.memory_space<any>>, %arg1: memref<2x4x16x16xf32, #tpu.memory_space<any>>, %arg2: memref<1x!tpu.dma_semaphore, #tpu.memory_space<semaphore_mem>>) attributes {dimension_semantics = [], scalar_prefetch = 0 : i64, scratch_operands = 1 : i64, tpu.core_type = #tpu.core_type<tc>} {
    %c0_i32 = arith.constant 0 : i32
    %0 = tpu.memref_slice %arg2[%c0_i32] : memref<1x!tpu.dma_semaphore, #tpu.memory_space<semaphore_mem>> -> memref<1x!tpu.dma_semaphore, #tpu.memory_space<semaphore_mem>>
    %1 = tpu.memref_squeeze %0 : memref<1x!tpu.dma_semaphore, #tpu.memory_space<semaphore_mem>> -> memref<!tpu.dma_semaphore, #tpu.memory_space<semaphore_mem>>
    tpu.enqueue_dma source(%arg0 : memref<2x4x16x16xf32, #tpu.memory_space<any>>) target(%arg1 : memref<2x4x16x16xf32, #tpu.memory_space<any>>) target_semaphore(%1 : memref<!tpu.dma_semaphore, #tpu.memory_space<semaphore_mem>>)
    %c0_i32_0 = arith.constant 0 : i32
    %2 = tpu.memref_slice %arg2[%c0_i32_0] : memref<1x!tpu.dma_semaphore, #tpu.memory_space<semaphore_mem>> -> memref<1x!tpu.dma_semaphore, #tpu.memory_space<semaphore_mem>>
    %3 = tpu.memref_squeeze %2 : memref<1x!tpu.dma_semaphore, #tpu.memory_space<semaphore_mem>> -> memref<!tpu.dma_semaphore, #tpu.memory_space<semaphore_mem>>
    tpu.wait_dma2 semaphore(%3 : memref<!tpu.dma_semaphore, #tpu.memory_space<semaphore_mem>>) src(%arg0 : memref<2x4x16x16xf32, #tpu.memory_space<any>>) dst(%arg1 : memref<2x4x16x16xf32, #tpu.memory_space<any>>)
    return
  }
}

</mosaic_0001>

<llo_original>
// kernel: tpu_custom_call.1
$region0: #{tpu_custom_call.1}
  #allocation0 [shape = 'u32[]', space=smem, size = 0x4, offset = 0x4, fixed_abs, tag = 'smem constant byte address 0x4 - core index']
  #allocation1 [shape = 'u32[72,128]{1,0:T(1,128)}', space=vmem, size = 0x9000, scoped, tag = 'internal scratch']
  #allocation2 [shape = 's32[1]{0}', space=sflag, size = 0x4, scoped, tag = 'scratch operand']
  #allocation3 [shape = 's32[]', space=sflag, size = 0x4, offset = 0, fixed_abs, tag = 'sflag constant byte address 0x0 - dummy sync flag']
  #allocation4 [shape = 'u32[0]{0}', space=smem, size = 0, offset = 0, fixed_abs, tag = 'smem constant byte address 0x0 - null']
  %s0 = inlined_call_operand.hbm [shape: f32[2,4,16,16], index: 0, kind: input, shape index: {}]
  %s1 = inlined_call_operand.hbm [shape: f32[2,4,16,16], index: 1, kind: output, shape index: {}]
  %s2 = sld [smem:[#allocation0]]
  $region2: #{tpu_custom_call.1} parent=0
    _
  %s4 = ssub.s32 1, %s2
  %s5 = scalar_select 0, %s4, %s2
  %s7 = sshll.u32 1, 14
  %s8 = sxor.u32 4294967295, %s7
  %s10 = sshll.u32 %s0, 4
  %s11 = int_to_ptr.hbm [resolvable:$true] %s10
  %s12 = sshll.u32 %s1, 4
  %s13 = int_to_ptr.hbm [resolvable:$true] %s12
  %16 = dma.general %s11, 2048, %s13, [#allocation2], [#allocation3], [#allocation4], 0, 0
  %s17 = smul.u32 2, 4
  %s18 = smul.u32 %s17, 16
  %s19 = smul.u32 %s18, 1
  %s20 = sshll.u32 %s19, 4
  %21 = dma.done [#allocation2], %s20
  %22 = vsyncmov [#allocation2]
  %s23 = vpop.sfrf %22
  %p24 = scmp.eq.s32.totalorder %s23, 0
  %p25 = pneg %p24
  %27 = shalt.err (%p25)

</llo_original>
